<compile_context>
chip_gen: v6e
topology: v6e:2x2x1
jax: 0.10.0
libtpu: 0.0.40
codegen_flags: <defaults>
</compile_context>

<pallas_src>
import jax
import jax.numpy as jnp
from jax.experimental import pallas as pl
from jax.experimental.pallas import tpu as pltpu

# CartPole-v1 defaults implied by the gym env in DQN.py
N_STATES = 4      # env.observation_space.shape[0]
N_ACTIONS = 2     # env.action_space.n
HIDDEN = 25

PAD_OUT = 128          # lane-dense padded output width
NEG_PAD = -1e30        # bias value for padded action lanes (never wins argmax)
SMALL_BATCH_MAX = 512  # below this: single block, no grid
TILE_B = 512           # batch tile for the gridded (large-batch) path


def _mlp_argmax_kernel(x_ref, w1_ref, b1_ref, w2_ref, b2_ref, q_ref, a_ref):
    # x:  (B, N_STATES)
    # w1: (N_STATES, HIDDEN)    b1: (1, HIDDEN)
    # w2: (HIDDEN, PAD_OUT)     b2: (1, PAD_OUT)  (padded lanes get NEG_PAD bias)
    # q:  (B, PAD_OUT) f32      a: (B, 1) int32 greedy action
    x = x_ref[...]
    h = jnp.dot(x, w1_ref[...], preferred_element_type=jnp.float32) + b1_ref[...]
    h = jnp.maximum(h, 0.0)                                   # ReLU on the VPU
    q = jnp.dot(h, w2_ref[...], preferred_element_type=jnp.float32) + b2_ref[...]
    q_ref[...] = q.astype(q_ref.dtype)                        # lane-dense store

    # Fused greedy action selection: first index attaining the row max.
    # Padded lanes carry NEG_PAD bias, so only real actions can win.
    col = jax.lax.broadcasted_iota(jnp.int32, q.shape, 1)
    qmax = jnp.max(q, axis=-1, keepdims=True)
    is_max = q >= qmax
    a_ref[...] = jnp.min(
        jnp.where(is_max, col, jnp.int32(q.shape[1])), axis=-1, keepdims=True
    )


def prepare_params(w1, b1, w2, b2):
    """One-time conversion from PyTorch layout (out, in) to kernel layout.

    Returns:
      w1_t:  (N_STATES, HIDDEN) f32
      b1_2d: (1, HIDDEN) f32
      w2_p:  (HIDDEN, PAD_OUT) f32  -- zero-padded beyond N_ACTIONS
      b2_p:  (1, PAD_OUT) f32       -- NEG_PAD beyond N_ACTIONS
    """
    w1_t = jnp.asarray(w1, jnp.float32).T
    b1_2d = jnp.asarray(b1, jnp.float32).reshape(1, -1)
    w2_t = jnp.asarray(w2, jnp.float32).T                      # (HIDDEN, N_ACTIONS)
    w2_p = jnp.zeros((HIDDEN, PAD_OUT), jnp.float32).at[:, :N_ACTIONS].set(w2_t)
    b2_p = jnp.full((1, PAD_OUT), NEG_PAD, jnp.float32).at[0, :N_ACTIONS].set(
        jnp.asarray(b2, jnp.float32)
    )
    return w1_t, b1_2d, w2_p, b2_p


@jax.jit
def net_forward(x, w1_t, b1_2d, w2_p, b2_p):
    """Returns (q_values (B, N_ACTIONS) f32, greedy_actions (B,) int32)."""
    B = x.shape[0]
    vmem = pltpu.MemorySpace.VMEM

    if B <= SMALL_BATCH_MAX:
        # Single block: everything resident in VMEM, one kernel launch.
        q_pad, actions = pl.pallas_call(
            _mlp_argmax_kernel,
            out_shape=(
                jax.ShapeDtypeStruct((B, PAD_OUT), jnp.float32),
                jax.ShapeDtypeStruct((B, 1), jnp.int32),
            ),
            in_specs=[pl.BlockSpec(memory_space=vmem)] * 5,
            out_specs=(
                pl.BlockSpec(memory_space=vmem),
                pl.BlockSpec(memory_space=vmem),
            ),
        )(x, w1_t, b1_2d, w2_p, b2_p)
    else:
        # Large replay batches / vectorized rollouts: grid over the batch.
        Bp = ((B + TILE_B - 1) // TILE_B) * TILE_B
        xp = jnp.pad(x, ((0, Bp - B), (0, 0)))
        q_pad, actions = pl.pallas_call(
            _mlp_argmax_kernel,
            out_shape=(
                jax.ShapeDtypeStruct((Bp, PAD_OUT), jnp.float32),
                jax.ShapeDtypeStruct((Bp, 1), jnp.int32),
            ),
            grid_spec=pltpu.PrefetchScalarGridSpec(
                num_scalar_prefetch=0,
                grid=(Bp // TILE_B,),
                in_specs=[
                    pl.BlockSpec((TILE_B, N_STATES), lambda i: (i, 0)),
                    pl.BlockSpec((N_STATES, HIDDEN), lambda i: (0, 0)),  # resident
                    pl.BlockSpec((1, HIDDEN), lambda i: (0, 0)),         # resident
                    pl.BlockSpec((HIDDEN, PAD_OUT), lambda i: (0, 0)),   # resident
                    pl.BlockSpec((1, PAD_OUT), lambda i: (0, 0)),        # resident
                ],
                out_specs=(
                    pl.BlockSpec((TILE_B, PAD_OUT), lambda i: (i, 0)),
                    pl.BlockSpec((TILE_B, 1), lambda i: (i, 0)),
                ),
            ),
            compiler_params=pltpu.CompilerParams(
                dimension_semantics=("parallel",)  # lets v7x use both TCs
            ),
        )(xp, w1_t, b1_2d, w2_p, b2_p)
        q_pad = q_pad[:B]
        actions = actions[:B]

    return q_pad[:, :N_ACTIONS], actions[:, 0]


def init_params(key):
    """Deterministic synthetic init matching the module's shapes (PyTorch layout).
    Weights ~ N(0, 0.1) as in Net.__init__; biases small uniform."""
    k1, k2, k3, k4 = jax.random.split(key, 4)
    w1 = 0.1 * jax.random.normal(k1, (HIDDEN, N_STATES), dtype=jnp.float32)
    b1 = 0.01 * jax.random.uniform(k2, (HIDDEN,), dtype=jnp.float32)
    w2 = 0.1 * jax.random.normal(k3, (N_ACTIONS, HIDDEN), dtype=jnp.float32)
    b2 = 0.01 * jax.random.uniform(k4, (N_ACTIONS,), dtype=jnp.float32)
    return w1, b1, w2, b2


def reference_forward(x, w1, b1, w2, b2):
    h = jnp.maximum(x @ w1.T + b1, 0.0)
    return h @ w2.T + b2


if __name__ == "__main__":
    key = jax.random.PRNGKey(0)
    k_x, k_x2, k_p = jax.random.split(key, 3)

    w1, b1, w2, b2 = init_params(k_p)
    params = prepare_params(w1, b1, w2, b2)   # one-time layout conversion

    # --- small batch (no-grid path), typical DQN action-selection call ---
    B = 8
    x = jax.random.normal(k_x, (B, N_STATES), dtype=jnp.float32)
    q, actions = net_forward(x, *params)
    q = jax.block_until_ready(q)
    actions = jax.block_until_ready(actions)

    ref_q = reference_forward(x, w1, b1, w2, b2)
    ref_a = jnp.argmax(ref_q, axis=-1).astype(jnp.int32)
    assert q.shape == (B, N_ACTIONS)
    assert actions.shape == (B,)
    assert jnp.allclose(q, ref_q, atol=1e-5, rtol=1e-5), "Q mismatch vs reference"
    assert jnp.array_equal(actions, ref_a), "action mismatch vs reference"

    # --- large batch (gridded path), replay-buffer style ---
    B2 = 1024
    x2 = jax.random.normal(k_x2, (B2, N_STATES), dtype=jnp.float32)
    q2, actions2 = net_forward(x2, *params)
    q2 = jax.block_until_ready(q2)

    ref_q2 = reference_forward(x2, w1, b1, w2, b2)
    ref_a2 = jnp.argmax(ref_q2, axis=-1).astype(jnp.int32)
    assert q2.shape == (B2, N_ACTIONS)
    assert jnp.allclose(q2, ref_q2, atol=1e-5, rtol=1e-5), "Q mismatch (grid path)"
    assert jnp.array_equal(actions2, ref_a2), "action mismatch (grid path)"

    print("KERNEL_OK")
</pallas_src>

<mosaic_0001>
module attributes {stable_mosaic.version = 11 : i64} {
  func.func @_mlp_argmax_kernel(%arg0: memref<8x4xf32, #tpu.memory_space<vmem>>, %arg1: memref<4x25xf32, #tpu.memory_space<vmem>>, %arg2: memref<1x25xf32, #tpu.memory_space<vmem>>, %arg3: memref<25x128xf32, #tpu.memory_space<vmem>>, %arg4: memref<1x128xf32, #tpu.memory_space<vmem>>, %arg5: memref<8x128xf32, #tpu.memory_space<vmem>>, %arg6: memref<8x1xi32, #tpu.memory_space<vmem>>) attributes {dimension_semantics = [], scalar_prefetch = 0 : i64, scratch_operands = 0 : i64, tpu.core_type = #tpu.core_type<tc>} {
    %c0 = arith.constant 0 : index
    %c0_0 = arith.constant 0 : index
    %0 = vector.load %arg0[%c0, %c0_0] : memref<8x4xf32, #tpu.memory_space<vmem>>, vector<8x4xf32>
    %c0_1 = arith.constant 0 : index
    %c0_2 = arith.constant 0 : index
    %1 = vector.load %arg1[%c0_1, %c0_2] : memref<4x25xf32, #tpu.memory_space<vmem>>, vector<4x25xf32>
    %cst = arith.constant dense<0.000000e+00> : vector<8x25xf32>
    %2 = tpu.matmul %0, %1, %cst {dimension_numbers = #tpu.dot_dimension_numbers<[1], [0], [0], [1], [0, 0, 1, 1], [], []>} : vector<8x4xf32>, vector<4x25xf32>, vector<8x25xf32> -> vector<8x25xf32>
    %c0_3 = arith.constant 0 : index
    %c0_4 = arith.constant 0 : index
    %3 = vector.load %arg2[%c0_3, %c0_4] : memref<1x25xf32, #tpu.memory_space<vmem>>, vector<1x25xf32>
    %4 = vector.broadcast %3 : vector<1x25xf32> to vector<8x25xf32>
    %5 = arith.addf %2, %4 : vector<8x25xf32>
    %cst_5 = arith.constant 0.000000e+00 : f32
    %6 = vector.broadcast %cst_5 : f32 to vector<8x25xf32>
    %7 = arith.maximumf %5, %6 : vector<8x25xf32>
    %c0_6 = arith.constant 0 : index
    %c0_7 = arith.constant 0 : index
    %8 = vector.load %arg3[%c0_6, %c0_7] : memref<25x128xf32, #tpu.memory_space<vmem>>, vector<25x128xf32>
    %cst_8 = arith.constant dense<0.000000e+00> : vector<8x128xf32>
    %9 = tpu.matmul %7, %8, %cst_8 {dimension_numbers = #tpu.dot_dimension_numbers<[1], [0], [0], [1], [0, 0, 1, 1], [], []>} : vector<8x25xf32>, vector<25x128xf32>, vector<8x128xf32> -> vector<8x128xf32>
    %c0_9 = arith.constant 0 : index
    %c0_10 = arith.constant 0 : index
    %10 = vector.load %arg4[%c0_9, %c0_10] : memref<1x128xf32, #tpu.memory_space<vmem>>, vector<1x128xf32>
    %11 = vector.broadcast %10 : vector<1x128xf32> to vector<8x128xf32>
    %12 = arith.addf %9, %11 : vector<8x128xf32>
    %c0_11 = arith.constant 0 : index
    %c0_12 = arith.constant 0 : index
    %13 = vector.load %arg5[%c0_11, %c0_12] : memref<8x128xf32, #tpu.memory_space<vmem>>, vector<8x128xf32>
    tpu.vector_store %arg5[%c0_11, %c0_12], %12 {strides = array<i32>} : memref<8x128xf32, #tpu.memory_space<vmem>>, vector<8x128xf32>,
    %14 = tpu.iota {dimensions = array<i32: 1>} : vector<8x128xi32>
    %cst_13 = arith.constant dense<0xFF800000> : vector<8xf32>
    %15 = vector.multi_reduction <maximumf>, %12, %cst_13 [1] : vector<8x128xf32> to vector<8xf32>
    %16 = vector.shape_cast %15 : vector<8xf32> to vector<8x1xf32>
    %17 = vector.broadcast %16 : vector<8x1xf32> to vector<8x128xf32>
    %18 = arith.cmpf oge, %12, %17 : vector<8x128xf32>
    %c128_i32 = arith.constant 128 : i32
    %19 = vector.broadcast %c128_i32 : i32 to vector<8x128xi32>
    %20 = arith.select %18, %14, %19 : vector<8x128xi1>, vector<8x128xi32>
    %cst_14 = arith.constant dense<2147483647> : vector<8xi32>
    %21 = vector.multi_reduction <minsi>, %20, %cst_14 [1] : vector<8x128xi32> to vector<8xi32>
    %22 = vector.shape_cast %21 : vector<8xi32> to vector<8x1xi32>
    %c0_15 = arith.constant 0 : index
    %c0_16 = arith.constant 0 : index
    %23 = vector.load %arg6[%c0_15, %c0_16] : memref<8x1xi32, #tpu.memory_space<vmem>>, vector<8x1xi32>
    tpu.vector_store %arg6[%c0_15, %c0_16], %22 {strides = array<i32>} : memref<8x1xi32, #tpu.memory_space<vmem>>, vector<8x1xi32>,
    return
  }
}

</mosaic_0001>

<llo_original>
// kernel: net_forward.1
$region0: #{net_forward.1}
  #allocation0 [shape = 'u32[]', space=smem, size = 0x4, offset = 0x4, fixed_abs, tag = 'smem constant byte address 0x4 - core index']
  #allocation1 [shape = 'u32[144,128]{1,0:T(1,128)}', space=vmem, size = 0x12000, scoped, tag = 'internal scratch']
  %s0 = inlined_call_operand.vmem [shape: f32[8,4], index: 0, kind: input, shape index: {}]
  %s1 = inlined_call_operand.vmem [shape: f32[4,25], index: 1, kind: input, shape index: {}]
  %s2 = inlined_call_operand.vmem [shape: f32[1,25], index: 2, kind: input, shape index: {}]
  %s3 = inlined_call_operand.hbm [shape: f32[25,128], index: 3, kind: input, shape index: {}]
  %s4 = inlined_call_operand.vmem [shape: f32[1,128], index: 4, kind: input, shape index: {}]
  %s5 = inlined_call_operand.vmem [shape: f32[8,128], index: 5, kind: output, shape index: {0}]
  %s6 = inlined_call_operand.vmem [shape: s32[8,1], index: 6, kind: output, shape index: {1}]
  %7 = xla_tuple %s5, %s6
  %s8 = sld [smem:[#allocation0]]
  $region42: #{net_forward.1} parent=0
    _
  %s10 = ssub.s32 1, %s8
  %s11 = scalar_select 0, %s10, %s8
  $region1: #{net_forward.1} parent=0
    #allocation2 [shape = 'u8[16384]{0}', space=vmem, size = 0x4000, scoped, tag = 'input window, operand 3, single buffered']
    #allocation3 [shape = 's32[1]{0}', space=sflag, size = 0x4, scoped, tag = 'scoped memory for net_forward.1']
    %12 = vsyncpa [#allocation3], 0
    // Predicated region
    $region2: #{net_forward.1} parent=1 // pred_check
      _
    $region3: #{net_forward.1} parent=1 // pred_check_branch
      %14 = sbr.rel (0) target = $region5
    $region4: #{net_forward.1} parent=1 // pred_region
      _
    $region5: #{net_forward.1} parent=1 // pred_fallthru
      _
    // Predicated region
    $region6: #{net_forward.1} parent=1 // pred_check
      _
    $region7: #{net_forward.1} parent=1 // pred_check_branch
      %16 = sbr.rel (0) target = $region9
    $region8: #{net_forward.1} parent=1 // pred_region
      _
    $region9: #{net_forward.1} parent=1 // pred_fallthru
      _
    // Predicated region
    $region10: #{net_forward.1} parent=1 // pred_check
      _
    $region11: #{net_forward.1} parent=1 // pred_check_branch
      %18 = sbr.rel (0) target = $region13
    $region12: #{net_forward.1} parent=1 // pred_region
      _
    $region13: #{net_forward.1} parent=1 // pred_fallthru
      _
    // Predicated region
    $region14: #{net_forward.1} parent=1 // pred_check
      _
    $region15: #{net_forward.1} parent=1 // pred_check_branch
      %20 = sbr.rel (0) target = $region17
    $region16: #{net_forward.1} parent=1 // pred_region
      %s22 = ssub.s32 512, 512
      %23 = vsyncadd [#allocation3], %s22
      %s24 = sshll.u32 [#allocation2], 4
      %s25 = int_to_ptr.vmem [resolvable:$true] %s24
      %30 = dma.hbm_to_vmem [thread:$0]  %s3, 512, %s25, [#allocation3], 128, 128, 8
    $region17: #{net_forward.1} parent=1 // pred_fallthru
      _
    // Predicated region
    $region18: #{net_forward.1} parent=1 // pred_check
      _
    $region19: #{net_forward.1} parent=1 // pred_check_branch
      %32 = sbr.rel (0) target = $region21
    $region20: #{net_forward.1} parent=1 // pred_region
      _
    $region21: #{net_forward.1} parent=1 // pred_fallthru
      _
    // Predicated region
    $region22: #{net_forward.1} parent=1 // pred_check
      _
    $region23: #{net_forward.1} parent=1 // pred_check_branch
      %34 = sbr.rel (0) target = $region25
    $region24: #{net_forward.1} parent=1 // pred_region
      %35 = dma.done [#allocation3], 512
    $region25: #{net_forward.1} parent=1 // pred_fallthru
      _
    %v36 = vld [vmem:[%s0] sm:$0xff]
    %v37 = vld [vmem:[%s1] sm:$0xf]
    %v38 = vld [vmem:[%s2] sm:$0x1]
    %v40 = vlaneseq
    %v41 = vshrl.u32 %v40, 7
    %v42 = vsub.s32 0, %v41
    %v43 = vrot.slane %v38, %v42
    %vm45 = vcmask 31744
    %v47 = vsel %vm45, %v36, 0
    %vm49 = vcmask 1043456
    %v51 = vsel %vm49, %v37, 0
    %53 = vmatprep.subr.mxu0 0.0
    %54 = vmatpush1.msra.mxu0 0.0
    %55 = vmatprep.subr.mxu0 0.0
    %56 = vmatpush1.msra.mxu0 0.0
    %57 = vmatprep.subr.mxu0 0.0
    %58 = vmatpush1.msra.mxu0 0.0
    %59 = vmatprep.subr.mxu0 0.0
    %60 = vmatpush1.msra.mxu0 0.0
    %61 = vmatprep.subr.mxu0 0.0
    %62 = vmatpush1.msra.mxu0 0.0
    %63 = vmatprep.subr.mxu0 0.0
    %64 = vmatpush1.msra.mxu0 0.0
    %65 = vmatprep.subr.mxu0 0.0
    %66 = vmatpush1.msra.mxu0 0.0
    %67 = vmatprep.subr.mxu0 0.0
    %68 = vmatpush1.msra.mxu0 0.0
    %69 = vmatprep.subr.mxu0 0.0
    %70 = vmatpush1.msra.mxu0 0.0
    %71 = vmatprep.subr.mxu0 0.0
    %72 = vmatpush1.msra.mxu0 0.0
    %73 = vmatprep.subr.mxu0 0.0
    %74 = vmatpush1.msra.mxu0 0.0
    %75 = vmatprep.subr.mxu0 0.0
    %76 = vmatpush1.msra.mxu0 0.0
    %77 = vmatprep.subr.mxu0 0.0
    %78 = vmatpush1.msra.mxu0 0.0
    %79 = vmatprep.subr.mxu0 0.0
    %80 = vmatpush1.msra.mxu0 0.0
    %81 = vmatprep.subr.mxu0 0.0
    %82 = vmatpush1.msra.mxu0 0.0
    %83 = vmatprep.subr.mxu0 0.0
    %84 = vmatpush1.msra.mxu0 %v51
    %85 = vmatprep.subr.mxu0 0.0
    %86 = vmatpush2.msra.mxu0 0.0
    %87 = vmatprep.subr.mxu0 0.0
    %88 = vmatpush2.msra.mxu0 0.0
    %89 = vmatprep.subr.mxu0 0.0
    %90 = vmatpush2.msra.mxu0 0.0
    %91 = vmatprep.subr.mxu0 0.0
    %92 = vmatpush2.msra.mxu0 0.0
    %93 = vmatprep.subr.mxu0 0.0
    %94 = vmatpush2.msra.mxu0 0.0
    %95 = vmatprep.subr.mxu0 0.0
    %96 = vmatpush2.msra.mxu0 0.0
    %97 = vmatprep.subr.mxu0 0.0
    %98 = vmatpush2.msra.mxu0 0.0
    %99 = vmatprep.subr.mxu0 0.0
    %100 = vmatpush2.msra.mxu0 0.0
    %101 = vmatprep.subr.mxu0 0.0
    %102 = vmatpush2.msra.mxu0 0.0
    %103 = vmatprep.subr.mxu0 0.0
    %104 = vmatpush2.msra.mxu0 0.0
    %105 = vmatprep.subr.mxu0 0.0
    %106 = vmatpush2.msra.mxu0 0.0
    %107 = vmatprep.subr.mxu0 0.0
    %108 = vmatpush2.msra.mxu0 0.0
    %109 = vmatprep.subr.mxu0 0.0
    %110 = vmatpush2.msra.mxu0 0.0
    %111 = vmatprep.subr.mxu0 0.0
    %112 = vmatpush2.msra.mxu0 0.0
    %113 = vmatprep.subr.mxu0 0.0
    %114 = vmatpush2.msra.mxu0 0.0
    %115 = vmatprep.subr.mxu0 0.0
    %116 = vmatpush2.msra.mxu0 0.0
    %117 = vmatprep.mubr.f32.mxu0 0.0
    %118 = vmatmul.mubr.f32.gmra.mxu0 %v47
    %v119 = vpop.f32.mrf.mxu0
    %v120 = vadd.f32 %v43, %v119
    %v121 = vpop.f32.mrf.mxu0
    %122 = vdwg.mxu0
    %v123 = vmax.f32 %v120, 0.0
    %v124 = vld [vmem:[#allocation2] sm:$0xff]
    %v125 = vld [vmem:[#allocation2 + $0x8] sm:$0xff]
    %v126 = vld [vmem:[#allocation2 + $0x10] sm:$0xff]
    %v127 = vld [vmem:[#allocation2 + $0x18] sm:$0x1]
    %v128 = vld [vmem:[%s4] sm:$0x1]
    %v130 = vlaneseq
    %v131 = vshrl.u32 %v130, 7
    %v132 = vsub.s32 0, %v131
    %v133 = vrot.slane %v128, %v132
    %vm135 = vcmask 203776
    %v137 = vsel %vm135, %v123, 0
    %vm139 = vcmask 1040384
    %v141 = vsel %vm139, %v127, 0
    %143 = vmatprep.subr.mxu0 0.0
    %144 = vmatpush1.msra.mxu0 0.0
    %145 = vmatprep.subr.mxu0 0.0
    %146 = vmatpush1.msra.mxu0 0.0
    %147 = vmatprep.subr.mxu0 0.0
    %148 = vmatpush1.msra.mxu0 0.0
    %149 = vmatprep.subr.mxu0 0.0
    %150 = vmatpush1.msra.mxu0 0.0
    %151 = vmatprep.subr.mxu0 0.0
    %152 = vmatpush1.msra.mxu0 0.0
    %153 = vmatprep.subr.mxu0 0.0
    %154 = vmatpush1.msra.mxu0 0.0
    %155 = vmatprep.subr.mxu0 0.0
    %156 = vmatpush1.msra.mxu0 0.0
    %157 = vmatprep.subr.mxu0 0.0
    %158 = vmatpush1.msra.mxu0 0.0
    %159 = vmatprep.subr.mxu0 0.0
    %160 = vmatpush1.msra.mxu0 0.0
    %161 = vmatprep.subr.mxu0 0.0
    %162 = vmatpush1.msra.mxu0 0.0
    %163 = vmatprep.subr.mxu0 0.0
    %164 = vmatpush1.msra.mxu0 0.0
    %165 = vmatprep.subr.mxu0 0.0
    %166 = vmatpush1.msra.mxu0 0.0
    %167 = vmatprep.subr.mxu0 0.0
    %168 = vmatpush1.msra.mxu0 %v141
    %169 = vmatprep.subr.mxu0 0.0
    %170 = vmatpush1.msra.mxu0 %v126
    %171 = vmatprep.subr.mxu0 0.0
    %172 = vmatpush1.msra.mxu0 %v125
    %173 = vmatprep.subr.mxu0 0.0
    %174 = vmatpush1.msra.mxu0 %v124
    %175 = vmatprep.subr.mxu0 0.0
    %176 = vmatpush2.msra.mxu0 0.0
    %177 = vmatprep.subr.mxu0 0.0
    %178 = vmatpush2.msra.mxu0 0.0
    %179 = vmatprep.subr.mxu0 0.0
    %180 = vmatpush2.msra.mxu0 0.0
    %181 = vmatprep.subr.mxu0 0.0
    %182 = vmatpush2.msra.mxu0 0.0
    %183 = vmatprep.subr.mxu0 0.0
    %184 = vmatpush2.msra.mxu0 0.0
    %185 = vmatprep.subr.mxu0 0.0
    %186 = vmatpush2.msra.mxu0 0.0
    %187 = vmatprep.subr.mxu0 0.0
    %188 = vmatpush2.msra.mxu0 0.0
    %189 = vmatprep.subr.mxu0 0.0
    %190 = vmatpush2.msra.mxu0 0.0
    %191 = vmatprep.subr.mxu0 0.0
    %192 = vmatpush2.msra.mxu0 0.0
    %193 = vmatprep.subr.mxu0 0.0
    %194 = vmatpush2.msra.mxu0 0.0
    %195 = vmatprep.subr.mxu0 0.0
    %196 = vmatpush2.msra.mxu0 0.0
    %197 = vmatprep.subr.mxu0 0.0
    %198 = vmatpush2.msra.mxu0 0.0
    %199 = vmatprep.subr.mxu0 0.0
    %200 = vmatpush2.msra.mxu0 0.0
    %201 = vmatprep.subr.mxu0 0.0
    %202 = vmatpush2.msra.mxu0 0.0
    %203 = vmatprep.subr.mxu0 0.0
    %204 = vmatpush2.msra.mxu0 0.0
    %205 = vmatprep.subr.mxu0 0.0
    %206 = vmatpush2.msra.mxu0 0.0
    %207 = vmatprep.mubr.f32.mxu0 0.0
    %208 = vmatmul.mubr.f32.gmra.mxu0 %v137
    %v209 = vpop.f32.mrf.mxu0
    %v210 = vadd.f32 %v133, %v209
    %v211 = vpop.f32.mrf.mxu0
    %212 = vdwg.mxu0
    %213 = vst [vmem:[%s5] sm:$0xff] %v210
    %v214 = vlaneseq
    %v215 = vand.u32 %v214, 127
    %216 = vmax.xlane.f32.xlu0 %v210
    %v217 = vpop.xlane.xlu0 %216
    %vm218 = vcmp.ge.f32.partialorder %v210, %v217
    %v219 = vsel %vm218, %v215, 128
    %v220 = vand.u32 %v219, 65535
    %v221 = vshra.s32 %v219, 16
    %v222 = vcvt.s32.f32 %v220
    %v223 = vcvt.s32.f32 %v221
    %224 = vmin.xlane.f32.xlu0 %v223
    %v225 = vpop.xlane.xlu0 %224
    %vm226 = vcmp.eq.f32.partialorder %v223, %v225
    %v227 = vsel %vm226, %v222, inf
    %228 = vmin.xlane.f32.xlu0 %v227
    %v229 = vpop.xlane.xlu0 %228
    %v230 = vcvt.f32.s32 %v229
    %v231 = vcvt.f32.s32 %v225
    %v232 = vshll.u32 %v231, 16
    %v233 = vadd.s32 %v232, %v230
    %vm234 = vcmask 7168
    %235 = vst.msk [vmem:[%s6] sm:$0xff] %vm234, %v233
    // Predicated region
    $region26: #{net_forward.1} parent=1 // pred_check
      _
    $region27: #{net_forward.1} parent=1 // pred_check_branch
      %237 = sbr.rel (0) target = $region29
    $region28: #{net_forward.1} parent=1 // pred_region
      _
    $region29: #{net_forward.1} parent=1 // pred_fallthru
      _
    // Predicated region
    $region30: #{net_forward.1} parent=1 // pred_check
      _
    $region31: #{net_forward.1} parent=1 // pred_check_branch
      %239 = sbr.rel (0) target = $region33
    $region32: #{net_forward.1} parent=1 // pred_region
      _
    $region33: #{net_forward.1} parent=1 // pred_fallthru
      _
    // Predicated region
    $region34: #{net_forward.1} parent=1 // pred_check
      _
    $region35: #{net_forward.1} parent=1 // pred_check_branch
      %241 = sbr.rel (0) target = $region37
    $region36: #{net_forward.1} parent=1 // pred_region
      _
    $region37: #{net_forward.1} parent=1 // pred_fallthru
      _
    // Predicated region
    $region38: #{net_forward.1} parent=1 // pred_check
      _
    $region39: #{net_forward.1} parent=1 // pred_check_branch
      %243 = sbr.rel (0) target = $region41
    $region40: #{net_forward.1} parent=1 // pred_region
      _
    $region41: #{net_forward.1} parent=1 // pred_fallthru
      _
    %244 = vsyncpa [#allocation3], 1

</llo_original>
